<compile_context>
chip_gen: v7x
topology: tpu7x:2x2x1
jax: 0.10.0
libtpu: 0.0.40
codegen_flags: <defaults>
</compile_context>

<pallas_src>
import functools
import math

import jax
import jax.numpy as jnp
from jax import lax
from jax.experimental import pallas as pl
from jax.experimental.pallas import tpu as pltpu


def _atan_pos(t):
    """Float32-accurate atan for t >= 0 (Cephes-style minimax), VPU/EUP only.

    Pallas/Mosaic has no guaranteed lowering for lax.atan, so we range-reduce
    and evaluate a minimax polynomial (matches libm atanf to ~1 ulp).
    """
    tan_3pi_8 = jnp.float32(2.414213562373095)
    tan_pi_8 = jnp.float32(0.41421356237309503)
    big = t > tan_3pi_8
    mid = jnp.logical_and(t > tan_pi_8, jnp.logical_not(big))
    safe_t = jnp.maximum(t, jnp.float32(1e-30))
    x = jnp.where(big, -1.0 / safe_t, jnp.where(mid, (t - 1.0) / (t + 1.0), t))
    y0 = jnp.where(
        big,
        jnp.float32(math.pi / 2),
        jnp.where(mid, jnp.float32(math.pi / 4), jnp.float32(0.0)),
    )
    z = x * x
    p = ((((jnp.float32(8.05374449538e-2) * z - jnp.float32(1.38776856032e-1)) * z
           + jnp.float32(1.99777106478e-1)) * z
          - jnp.float32(3.33329491539e-1)) * z * x + x)
    return y0 + p


def hog_fused_kernel(x_ref, o_ref, *, cell_size, n_bins, eps):
    """Fused HoG forward for one image.

    x_ref: (C, n_cr, cell_h, W) f32 image, rows grouped by cell (batch dim
           squeezed away by the BlockSpec).
    o_ref: (4*n_bins, n_rows, n_cols) f32 block-normalized features,
           bins-major (transposed to reference layout in the wrapper).
    """
    ch, cw = cell_size
    C, n_cr, _, W = x_ref.shape
    n_cc = W // cw
    n_rows = n_cr - 1
    n_cols = n_cc - 1
    f32 = jnp.float32

    # ---- Row selection --------------------------------------------------------
    # Reference-bug decimation: only the bottom-right pixel of each cell,
    # (k*ch + ch - 1, l*cw + cw - 1), votes.  So only rows k*ch + {ch-2, ch-1, ch}
    # are ever needed; read those with integer indexing and sum channels there.
    def rows_at(sub_row):                                       # -> (n_cr, W)
        acc = x_ref[0, :, sub_row, :]
        for c in range(1, C):
            acc = acc + x_ref[c, :, sub_row, :]
        return acc

    centre = rows_at(ch - 1)                                    # x[k*ch + ch - 1, :]
    if ch >= 2:
        above = rows_at(ch - 2)                                 # x[k*ch + ch - 2, :]
    else:
        # ch == 1: the "above" row of cell k is cell k-1's row; zero pad at k=0.
        above = jnp.concatenate(
            [jnp.zeros((1, W), f32), centre[:n_cr - 1, :]], axis=0)

    # "below" row of cell k is sub-row 0 of cell k+1; the conv2d bottom zero-pad
    # for the last cell row is an explicit zero row (no out-of-bounds read).
    below = x_ref[0, pl.ds(1, n_cr - 1), 0, :]
    for c in range(1, C):
        below = below + x_ref[c, pl.ds(1, n_cr - 1), 0, :]
    below = jnp.concatenate([below, jnp.zeros((1, W), f32)], axis=0)

    g_v_rows = below - above                                    # (n_cr, W)

    # ---- Column selection on the MXU (exact 0/±1 masks in f32) ----------------
    col_ids = lax.broadcasted_iota(jnp.int32, (W, n_cc), 0)
    centre_col = lax.broadcasted_iota(jnp.int32, (W, n_cc), 1) * cw + (cw - 1)
    m_centre = (col_ids == centre_col).astype(f32)              # picks col c_l
    m_hdiff = ((col_ids == centre_col + 1).astype(f32)          # +x[., c_l + 1]
               - (col_ids == centre_col - 1).astype(f32))       # -x[., c_l - 1]
    # (c_l+1 == W and c_l-1 == -1 match nothing -> conv2d zero padding.)

    g_v = jnp.dot(g_v_rows, m_centre, preferred_element_type=f32)   # (n_cr, n_cc)
    g_h = jnp.dot(centre, m_hdiff, preferred_element_type=f32)      # (n_cr, n_cc)

    # ---- Magnitude / angle (reference: sqrt(..+1e-6), |atan(G_h/(G_v+eps))|) --
    mag = jnp.sqrt(g_v * g_v + g_h * g_h + f32(1e-6))
    ratio = jnp.abs(g_h / (g_v + f32(eps)))                     # atan is odd
    ang = _atan_pos(ratio) * f32(180.0 / math.pi)

    # ---- Soft binning (divides by the bin width become multiplies) ------------
    delta = f32(180.0 / n_bins)
    inv_delta = f32(n_bins / 180.0)
    jf = jnp.floor(ang * inv_delta - f32(0.5))                  # in {-1, ..}
    c_j1 = delta * (jf + f32(1.5))                              # centre of bin j+1
    vj = mag * ((c_j1 - ang) * inv_delta)                       # vote for bin j
    vj1 = mag - vj                                              # vote for bin j+1
    # TODO(synk): reference rounds C_j / V_j / features to 9 decimals via
    # Python round() in float64; negligible at float32, not reproduced.

    ji = jf.astype(jnp.int32)
    j_lo = jnp.where(ji < 0, ji + n_bins, ji)                   # Python bins[-1] wrap
    j_hi = ji + 1                                               # < n_bins (ang <= 90)

    # ---- Per-cell histograms, bins-major layout (n_bins, n_cr, n_cc) ----------
    bin_ids = lax.broadcasted_iota(jnp.int32, (n_bins, n_cr, n_cc), 0)
    hist = (vj[None] * (bin_ids == j_lo[None]).astype(f32)
            + vj1[None] * (bin_ids == j_hi[None]).astype(f32))

    # ---- 2x2 cell blocks (reference order) stacked on the leading axis --------
    q00 = hist[:, :n_rows, :n_cols]
    q01 = hist[:, :n_rows, 1:]
    q10 = hist[:, 1:, :n_cols]
    q11 = hist[:, 1:, 1:]
    block = jnp.concatenate([q00, q01, q10, q11], axis=0)       # (4*n_bins, nr, nc)

    # ---- L2 block normalization: VPU adds over the leading axis, 1 divide -----
    norm = jnp.sqrt(jnp.sum(block * block, axis=0, keepdims=True))
    o_ref[...] = block * (f32(1.0) / (norm + f32(eps)))


def hog_forward(x, cell_size=(8, 8), n_bins=9, eps=1e-9):
    """JAX/Pallas equivalent of HoGLayer.forward.

    x: (B, C, H, W) float32 (NCHW).  The reference module only supports B == 1
    (its .squeeze()/.item() path); we generalize with one image per grid step.
    Returns (features, n_rows, n_cols); features is (n_rows, n_cols, 4*n_bins)
    for B == 1, otherwise (B, n_rows, n_cols, 4*n_bins).
    """
    assert x.ndim == 4
    B, C, H, W = x.shape
    assert C in (1, 3)
    ch, cw = cell_size
    assert H % ch == 0 and W % cw == 0, "Chose proper cell size"
    n_cr, n_cc = H // ch, W // cw
    n_rows, n_cols = n_cr - 1, n_cc - 1
    assert n_rows >= 1 and n_cols >= 1, "need at least a 2x2 grid of cells"

    if x.dtype != jnp.float32:
        x = x.astype(jnp.float32)

    # Free (metadata-only) reshape so the kernel selects per-cell rows with
    # plain integer indexing instead of one-hot masks / strided gathers.
    x5 = x.reshape(B, C, n_cr, ch, W)

    # VMEM budget: double-buffered input + output blocks + small temps.
    in_bytes = C * H * W * 4
    out_bytes = 4 * n_bins * n_rows * n_cols * 4
    temp_bytes = (10 * n_cr * W + 2 * W * n_cc + 12 * n_bins * n_cr * n_cc) * 4
    vmem_limit = int(min(128 * 1024 * 1024,
                         max(32 * 1024 * 1024,
                             2 * in_bytes + 2 * out_bytes + temp_bytes + (4 << 20))))

    raw = pl.pallas_call(
        functools.partial(hog_fused_kernel, cell_size=(ch, cw),
                          n_bins=n_bins, eps=eps),
        grid=(B,),
        in_specs=[pl.BlockSpec((None, C, n_cr, ch, W),
                               lambda b: (b, 0, 0, 0, 0))],
        out_specs=pl.BlockSpec((None, 4 * n_bins, n_rows, n_cols),
                               lambda b: (b, 0, 0, 0)),
        out_shape=jax.ShapeDtypeStruct((B, 4 * n_bins, n_rows, n_cols),
                                       jnp.float32),
        compiler_params=pltpu.CompilerParams(
            dimension_semantics=("parallel",),
            vmem_limit_bytes=vmem_limit),
    )(x5)

    # Tiny wrapper-side transpose back to the reference (n_rows, n_cols, 36)
    # layout; the kernel keeps everything bins-major / lane-dense.
    features = jnp.transpose(raw, (0, 2, 3, 1))
    if B == 1:
        features = features[0]
    return features, n_rows, n_cols


if __name__ == "__main__":
    key = jax.random.PRNGKey(0)
    # batch=2, 3 channels, 64x64, cell_size=(8,8) -> 8x8 cells -> 7x7 blocks of 36.
    x = jax.random.uniform(key, (2, 3, 64, 64), dtype=jnp.float32)

    features, n_rows, n_cols = hog_forward(x, cell_size=(8, 8), n_bins=9)
    features = jax.block_until_ready(features)

    assert features.shape == (2, n_rows, n_cols, 36), features.shape
    assert n_rows == 7 and n_cols == 7
    assert bool(jnp.all(jnp.isfinite(features)))
    # Block-normalized votes: non-negative (up to fp noise), each element <= 1.
    assert bool(jnp.all(features >= -1e-3))
    assert bool(jnp.all(features <= 1.0 + 1e-3))
    print("KERNEL_OK")
</pallas_src>

<mosaic_0001>
module attributes {stable_mosaic.version = 11 : i64} {
  func.func @hog_fused_kernel(%arg0: i32, %arg1: memref<1x3x8x8x64xf32, #tpu.memory_space<vmem>>, %arg2: memref<1x36x7x7xf32, #tpu.memory_space<vmem>>) attributes {dimension_semantics = [#tpu.dimension_semantics<parallel>], iteration_bounds = array<i64: 2>, scalar_prefetch = 0 : i64, scratch_operands = 0 : i64, tpu.core_type = #tpu.core_type<tc>, window_params = [{transform_indices = @transform_0, window_bounds = array<i64: 1, 3, 8, 8, 64>}, {transform_indices = @transform_1, window_bounds = array<i64: 1, 36, 7, 7>}]} {
    %c0 = arith.constant 0 : index
    %c0_0 = arith.constant 0 : index
    %c0_1 = arith.constant 0 : index
    %c7 = arith.constant 7 : index
    %c0_2 = arith.constant 0 : index
    %0 = vector.load %arg1[%c0, %c0_0, %c0_1, %c7, %c0_2] : memref<1x3x8x8x64xf32, #tpu.memory_space<vmem>>, vector<1x1x8x1x64xf32>
    %1 = vector.shape_cast %0 : vector<1x1x8x1x64xf32> to vector<8x64xf32>
    %c0_3 = arith.constant 0 : index
    %c1 = arith.constant 1 : index
    %c0_4 = arith.constant 0 : index
    %c7_5 = arith.constant 7 : index
    %c0_6 = arith.constant 0 : index
    %2 = vector.load %arg1[%c0_3, %c1, %c0_4, %c7_5, %c0_6] : memref<1x3x8x8x64xf32, #tpu.memory_space<vmem>>, vector<1x1x8x1x64xf32>
    %3 = vector.shape_cast %2 : vector<1x1x8x1x64xf32> to vector<8x64xf32>
    %4 = arith.addf %1, %3 : vector<8x64xf32>
    %c0_7 = arith.constant 0 : index
    %c2 = arith.constant 2 : index
    %c0_8 = arith.constant 0 : index
    %c7_9 = arith.constant 7 : index
    %c0_10 = arith.constant 0 : index
    %5 = vector.load %arg1[%c0_7, %c2, %c0_8, %c7_9, %c0_10] : memref<1x3x8x8x64xf32, #tpu.memory_space<vmem>>, vector<1x1x8x1x64xf32>
    %6 = vector.shape_cast %5 : vector<1x1x8x1x64xf32> to vector<8x64xf32>
    %7 = arith.addf %4, %6 : vector<8x64xf32>
    %c0_11 = arith.constant 0 : index
    %c0_12 = arith.constant 0 : index
    %c0_13 = arith.constant 0 : index
    %c6 = arith.constant 6 : index
    %c0_14 = arith.constant 0 : index
    %8 = vector.load %arg1[%c0_11, %c0_12, %c0_13, %c6, %c0_14] : memref<1x3x8x8x64xf32, #tpu.memory_space<vmem>>, vector<1x1x8x1x64xf32>
    %9 = vector.shape_cast %8 : vector<1x1x8x1x64xf32> to vector<8x64xf32>
    %c0_15 = arith.constant 0 : index
    %c1_16 = arith.constant 1 : index
    %c0_17 = arith.constant 0 : index
    %c6_18 = arith.constant 6 : index
    %c0_19 = arith.constant 0 : index
    %10 = vector.load %arg1[%c0_15, %c1_16, %c0_17, %c6_18, %c0_19] : memref<1x3x8x8x64xf32, #tpu.memory_space<vmem>>, vector<1x1x8x1x64xf32>
    %11 = vector.shape_cast %10 : vector<1x1x8x1x64xf32> to vector<8x64xf32>
    %12 = arith.addf %9, %11 : vector<8x64xf32>
    %c0_20 = arith.constant 0 : index
    %c2_21 = arith.constant 2 : index
    %c0_22 = arith.constant 0 : index
    %c6_23 = arith.constant 6 : index
    %c0_24 = arith.constant 0 : index
    %13 = vector.load %arg1[%c0_20, %c2_21, %c0_22, %c6_23, %c0_24] : memref<1x3x8x8x64xf32, #tpu.memory_space<vmem>>, vector<1x1x8x1x64xf32>
    %14 = vector.shape_cast %13 : vector<1x1x8x1x64xf32> to vector<8x64xf32>
    %15 = arith.addf %12, %14 : vector<8x64xf32>
    %c0_25 = arith.constant 0 : index
    %c0_26 = arith.constant 0 : index
    %c1_27 = arith.constant 1 : index
    %c0_28 = arith.constant 0 : index
    %c0_29 = arith.constant 0 : index
    %16 = vector.load %arg1[%c0_25, %c0_26, %c1_27, %c0_28, %c0_29] : memref<1x3x8x8x64xf32, #tpu.memory_space<vmem>>, vector<1x1x7x1x64xf32>
    %17 = vector.shape_cast %16 : vector<1x1x7x1x64xf32> to vector<7x64xf32>
    %c0_30 = arith.constant 0 : index
    %c1_31 = arith.constant 1 : index
    %c1_32 = arith.constant 1 : index
    %c0_33 = arith.constant 0 : index
    %c0_34 = arith.constant 0 : index
    %18 = vector.load %arg1[%c0_30, %c1_31, %c1_32, %c0_33, %c0_34] : memref<1x3x8x8x64xf32, #tpu.memory_space<vmem>>, vector<1x1x7x1x64xf32>
    %19 = vector.shape_cast %18 : vector<1x1x7x1x64xf32> to vector<7x64xf32>
    %20 = arith.addf %17, %19 : vector<7x64xf32>
    %c0_35 = arith.constant 0 : index
    %c2_36 = arith.constant 2 : index
    %c1_37 = arith.constant 1 : index
    %c0_38 = arith.constant 0 : index
    %c0_39 = arith.constant 0 : index
    %21 = vector.load %arg1[%c0_35, %c2_36, %c1_37, %c0_38, %c0_39] : memref<1x3x8x8x64xf32, #tpu.memory_space<vmem>>, vector<1x1x7x1x64xf32>
    %22 = vector.shape_cast %21 : vector<1x1x7x1x64xf32> to vector<7x64xf32>
    %23 = arith.addf %20, %22 : vector<7x64xf32>
    %cst = arith.constant 0.000000e+00 : f32
    %24 = vector.broadcast %cst : f32 to vector<1x64xf32>
    %25 = tpu.concatenate %23, %24 in 0 : vector<7x64xf32>, vector<1x64xf32> -> vector<8x64xf32>
    %26 = arith.subf %25, %15 : vector<8x64xf32>
    %27 = tpu.iota {dimensions = array<i32: 0>} : vector<64x8xi32>
    %28 = tpu.iota {dimensions = array<i32: 1>} : vector<64x8xi32>
    %c8_i32 = arith.constant 8 : i32
    %29 = vector.broadcast %c8_i32 : i32 to vector<64x8xi32>
    %30 = arith.muli %28, %29 : vector<64x8xi32>
    %c7_i32 = arith.constant 7 : i32
    %31 = vector.broadcast %c7_i32 : i32 to vector<64x8xi32>
    %32 = arith.addi %30, %31 : vector<64x8xi32>
    %33 = arith.cmpi eq, %27, %32 : vector<64x8xi32>
    %34 = arith.extui %33 : vector<64x8xi1> to vector<64x8xi32>
    %35 = arith.sitofp %34 : vector<64x8xi32> to vector<64x8xf32>
    %c1_i32 = arith.constant 1 : i32
    %36 = vector.broadcast %c1_i32 : i32 to vector<64x8xi32>
    %37 = arith.addi %32, %36 : vector<64x8xi32>
    %38 = arith.cmpi eq, %27, %37 : vector<64x8xi32>
    %39 = arith.extui %38 : vector<64x8xi1> to vector<64x8xi32>
    %40 = arith.sitofp %39 : vector<64x8xi32> to vector<64x8xf32>
    %c1_i32_40 = arith.constant 1 : i32
    %41 = vector.broadcast %c1_i32_40 : i32 to vector<64x8xi32>
    %42 = arith.subi %32, %41 : vector<64x8xi32>
    %43 = arith.cmpi eq, %27, %42 : vector<64x8xi32>
    %44 = arith.extui %43 : vector<64x8xi1> to vector<64x8xi32>
    %45 = arith.sitofp %44 : vector<64x8xi32> to vector<64x8xf32>
    %46 = arith.subf %40, %45 : vector<64x8xf32>
    %cst_41 = arith.constant dense<0.000000e+00> : vector<8x8xf32>
    %47 = tpu.matmul %26, %35, %cst_41 {dimension_numbers = #tpu.dot_dimension_numbers<[1], [0], [0], [1], [0, 0, 1, 1], [], []>} : vector<8x64xf32>, vector<64x8xf32>, vector<8x8xf32> -> vector<8x8xf32>
    %cst_42 = arith.constant dense<0.000000e+00> : vector<8x8xf32>
    %48 = tpu.matmul %7, %46, %cst_42 {dimension_numbers = #tpu.dot_dimension_numbers<[1], [0], [0], [1], [0, 0, 1, 1], [], []>} : vector<8x64xf32>, vector<64x8xf32>, vector<8x8xf32> -> vector<8x8xf32>
    %49 = arith.mulf %47, %47 : vector<8x8xf32>
    %50 = arith.mulf %48, %48 : vector<8x8xf32>
    %51 = arith.addf %49, %50 : vector<8x8xf32>
    %cst_43 = arith.constant 9.99999997E-7 : f32
    %52 = vector.broadcast %cst_43 : f32 to vector<8x8xf32>
    %53 = arith.addf %51, %52 : vector<8x8xf32>
    %54 = math.sqrt %53 : vector<8x8xf32>
    %cst_44 = arith.constant 9.99999971E-10 : f32
    %55 = vector.broadcast %cst_44 : f32 to vector<8x8xf32>
    %56 = arith.addf %47, %55 : vector<8x8xf32>
    %57 = arith.divf %48, %56 : vector<8x8xf32>
    %58 = math.absf %57 : vector<8x8xf32>
    %cst_45 = arith.constant 2.41421366 : f32
    %59 = vector.broadcast %cst_45 : f32 to vector<8x8xf32>
    %60 = arith.cmpf ogt, %58, %59 : vector<8x8xf32>
    %cst_46 = arith.constant 0.414213568 : f32
    %61 = vector.broadcast %cst_46 : f32 to vector<8x8xf32>
    %62 = arith.cmpf ogt, %58, %61 : vector<8x8xf32>
    %cst_47 = arith.constant dense<true> : vector<8x8xi1>
    %63 = arith.xori %60, %cst_47 : vector<8x8xi1>
    %64 = arith.andi %62, %63 : vector<8x8xi1>
    %cst_48 = arith.constant 1.000000e-30 : f32
    %65 = vector.broadcast %cst_48 : f32 to vector<8x8xf32>
    %66 = arith.maximumf %58, %65 : vector<8x8xf32>
    %cst_49 = arith.constant -1.000000e+00 : f32
    %67 = vector.broadcast %cst_49 : f32 to vector<8x8xf32>
    %68 = arith.divf %67, %66 : vector<8x8xf32>
    %cst_50 = arith.constant 1.000000e+00 : f32
    %69 = vector.broadcast %cst_50 : f32 to vector<8x8xf32>
    %70 = arith.subf %58, %69 : vector<8x8xf32>
    %cst_51 = arith.constant 1.000000e+00 : f32
    %71 = vector.broadcast %cst_51 : f32 to vector<8x8xf32>
    %72 = arith.addf %58, %71 : vector<8x8xf32>
    %73 = arith.divf %70, %72 : vector<8x8xf32>
    %74 = arith.select %64, %73, %58 : vector<8x8xi1>, vector<8x8xf32>
    %75 = arith.select %60, %68, %74 : vector<8x8xi1>, vector<8x8xf32>
    %cst_52 = arith.constant 0.785398185 : f32
    %cst_53 = arith.constant 0.000000e+00 : f32
    %76 = vector.broadcast %cst_52 : f32 to vector<8x8xf32>
    %77 = vector.broadcast %cst_53 : f32 to vector<8x8xf32>
    %78 = arith.select %64, %76, %77 : vector<8x8xi1>, vector<8x8xf32>
    %cst_54 = arith.constant 1.57079637 : f32
    %79 = vector.broadcast %cst_54 : f32 to vector<8x8xf32>
    %80 = arith.select %60, %79, %78 : vector<8x8xi1>, vector<8x8xf32>
    %81 = arith.mulf %75, %75 : vector<8x8xf32>
    %cst_55 = arith.constant 0.0805374458 : f32
    %82 = vector.broadcast %cst_55 : f32 to vector<8x8xf32>
    %83 = arith.mulf %82, %81 : vector<8x8xf32>
    %cst_56 = arith.constant 0.138776854 : f32
    %84 = vector.broadcast %cst_56 : f32 to vector<8x8xf32>
    %85 = arith.subf %83, %84 : vector<8x8xf32>
    %86 = arith.mulf %85, %81 : vector<8x8xf32>
    %cst_57 = arith.constant 0.199777111 : f32
    %87 = vector.broadcast %cst_57 : f32 to vector<8x8xf32>
    %88 = arith.addf %86, %87 : vector<8x8xf32>
    %89 = arith.mulf %88, %81 : vector<8x8xf32>
    %cst_58 = arith.constant 0.333329499 : f32
    %90 = vector.broadcast %cst_58 : f32 to vector<8x8xf32>
    %91 = arith.subf %89, %90 : vector<8x8xf32>
    %92 = arith.mulf %91, %81 : vector<8x8xf32>
    %93 = arith.mulf %92, %75 : vector<8x8xf32>
    %94 = arith.addf %93, %75 : vector<8x8xf32>
    %95 = arith.addf %80, %94 : vector<8x8xf32>
    %cst_59 = arith.constant 57.2957802 : f32
    %96 = vector.broadcast %cst_59 : f32 to vector<8x8xf32>
    %97 = arith.mulf %95, %96 : vector<8x8xf32>
    %cst_60 = arith.constant 5.000000e-02 : f32
    %98 = vector.broadcast %cst_60 : f32 to vector<8x8xf32>
    %99 = arith.mulf %97, %98 : vector<8x8xf32>
    %cst_61 = arith.constant 5.000000e-01 : f32
    %100 = vector.broadcast %cst_61 : f32 to vector<8x8xf32>
    %101 = arith.subf %99, %100 : vector<8x8xf32>
    %102 = math.floor %101 : vector<8x8xf32>
    %cst_62 = arith.constant 1.500000e+00 : f32
    %103 = vector.broadcast %cst_62 : f32 to vector<8x8xf32>
    %104 = arith.addf %102, %103 : vector<8x8xf32>
    %cst_63 = arith.constant 2.000000e+01 : f32
    %105 = vector.broadcast %cst_63 : f32 to vector<8x8xf32>
    %106 = arith.mulf %105, %104 : vector<8x8xf32>
    %107 = arith.subf %106, %97 : vector<8x8xf32>
    %cst_64 = arith.constant 5.000000e-02 : f32
    %108 = vector.broadcast %cst_64 : f32 to vector<8x8xf32>
    %109 = arith.mulf %107, %108 : vector<8x8xf32>
    %110 = arith.mulf %54, %109 : vector<8x8xf32>
    %111 = arith.subf %54, %110 : vector<8x8xf32>
    %112 = arith.fptosi %102 : vector<8x8xf32> to vector<8x8xi32>
    %c0_i32 = arith.constant 0 : i32
    %113 = vector.broadcast %c0_i32 : i32 to vector<8x8xi32>
    %114 = arith.cmpi slt, %112, %113 : vector<8x8xi32>
    %c9_i32 = arith.constant 9 : i32
    %115 = vector.broadcast %c9_i32 : i32 to vector<8x8xi32>
    %116 = arith.addi %112, %115 : vector<8x8xi32>
    %117 = arith.select %114, %116, %112 : vector<8x8xi1>, vector<8x8xi32>
    %c1_i32_65 = arith.constant 1 : i32
    %118 = vector.broadcast %c1_i32_65 : i32 to vector<8x8xi32>
    %119 = arith.addi %112, %118 : vector<8x8xi32>
    %120 = tpu.iota {dimensions = array<i32: 0>} : vector<9x8x8xi32>
    %121 = vector.shape_cast %110 : vector<8x8xf32> to vector<1x8x8xf32>
    %122 = vector.shape_cast %117 : vector<8x8xi32> to vector<1x8x8xi32>
    %123 = vector.broadcast %122 : vector<1x8x8xi32> to vector<9x8x8xi32>
    %124 = arith.cmpi eq, %120, %123 : vector<9x8x8xi32>
    %125 = arith.extui %124 : vector<9x8x8xi1> to vector<9x8x8xi32>
    %126 = arith.sitofp %125 : vector<9x8x8xi32> to vector<9x8x8xf32>
    %127 = vector.broadcast %121 : vector<1x8x8xf32> to vector<9x8x8xf32>
    %128 = arith.mulf %127, %126 : vector<9x8x8xf32>
    %129 = vector.shape_cast %111 : vector<8x8xf32> to vector<1x8x8xf32>
    %130 = vector.shape_cast %119 : vector<8x8xi32> to vector<1x8x8xi32>
    %131 = vector.broadcast %130 : vector<1x8x8xi32> to vector<9x8x8xi32>
    %132 = arith.cmpi eq, %120, %131 : vector<9x8x8xi32>
    %133 = arith.extui %132 : vector<9x8x8xi1> to vector<9x8x8xi32>
    %134 = arith.sitofp %133 : vector<9x8x8xi32> to vector<9x8x8xf32>
    %135 = vector.broadcast %129 : vector<1x8x8xf32> to vector<9x8x8xf32>
    %136 = arith.mulf %135, %134 : vector<9x8x8xf32>
    %137 = arith.addf %128, %136 : vector<9x8x8xf32>
    %138 = vector.extract_strided_slice %137 {offsets = [0, 0, 0], sizes = [9, 7, 7], strides = [1, 1, 1]} : vector<9x8x8xf32> to vector<9x7x7xf32>
    %139 = vector.extract_strided_slice %137 {offsets = [0, 0, 1], sizes = [9, 7, 7], strides = [1, 1, 1]} : vector<9x8x8xf32> to vector<9x7x7xf32>
    %140 = vector.extract_strided_slice %137 {offsets = [0, 1, 0], sizes = [9, 7, 7], strides = [1, 1, 1]} : vector<9x8x8xf32> to vector<9x7x7xf32>
    %141 = vector.extract_strided_slice %137 {offsets = [0, 1, 1], sizes = [9, 7, 7], strides = [1, 1, 1]} : vector<9x8x8xf32> to vector<9x7x7xf32>
    %142 = tpu.concatenate %138, %139, %140, %141 in 0 : vector<9x7x7xf32>, vector<9x7x7xf32>, vector<9x7x7xf32>, vector<9x7x7xf32> -> vector<36x7x7xf32>
    %143 = arith.mulf %142, %142 : vector<36x7x7xf32>
    %cst_66 = arith.constant dense<0.000000e+00> : vector<7x7xf32>
    %144 = vector.multi_reduction <add>, %143, %cst_66 [0] : vector<36x7x7xf32> to vector<7x7xf32>
    %145 = vector.shape_cast %144 : vector<7x7xf32> to vector<1x7x7xf32>
    %146 = math.sqrt %145 : vector<1x7x7xf32>
    %cst_67 = arith.constant 9.99999971E-10 : f32
    %147 = vector.broadcast %cst_67 : f32 to vector<1x7x7xf32>
    %148 = arith.addf %146, %147 : vector<1x7x7xf32>
    %cst_68 = arith.constant 1.000000e+00 : f32
    %149 = vector.broadcast %cst_68 : f32 to vector<1x7x7xf32>
    %150 = arith.divf %149, %148 : vector<1x7x7xf32>
    %151 = vector.broadcast %150 : vector<1x7x7xf32> to vector<36x7x7xf32>
    %152 = arith.mulf %142, %151 : vector<36x7x7xf32>
    %c0_69 = arith.constant 0 : index
    %c0_70 = arith.constant 0 : index
    %c0_71 = arith.constant 0 : index
    %c0_72 = arith.constant 0 : index
    %153 = vector.load %arg2[%c0_69, %c0_70, %c0_71, %c0_72] : memref<1x36x7x7xf32, #tpu.memory_space<vmem>>, vector<1x36x7x7xf32>
    %154 = vector.shape_cast %153 : vector<1x36x7x7xf32> to vector<36x7x7xf32>
    %155 = vector.shape_cast %152 : vector<36x7x7xf32> to vector<1x36x7x7xf32>
    tpu.vector_store %arg2[%c0_69, %c0_70, %c0_71, %c0_72], %155 {strides = array<i32>} : memref<1x36x7x7xf32, #tpu.memory_space<vmem>>, vector<1x36x7x7xf32>,
    return
  }
  func.func @transform_0(%arg0: i32) -> (i32, i32, i32, i32, i32) {
    %c0_i32 = arith.constant 0 : i32
    %c0_i32_0 = arith.constant 0 : i32
    %c0_i32_1 = arith.constant 0 : i32
    %c0_i32_2 = arith.constant 0 : i32
    %c0_i32_3 = arith.constant 0 : i32
    return %arg0, %c0_i32, %c0_i32_0, %c0_i32_1, %c0_i32_2 : i32, i32, i32, i32, i32
  }
  func.func @transform_1(%arg0: i32) -> (i32, i32, i32, i32) {
    %c0_i32 = arith.constant 0 : i32
    %c0_i32_0 = arith.constant 0 : i32
    %c0_i32_1 = arith.constant 0 : i32
    %c0_i32_2 = arith.constant 0 : i32
    return %arg0, %c0_i32, %c0_i32_0, %c0_i32_1 : i32, i32, i32, i32
  }
}

</mosaic_0001>

<llo_original>
// kernel: tpu_custom_call.1
$region0: #{tpu_custom_call.1}
  #allocation0 [shape = 'u32[]', space=smem, size = 0x4, offset = 0x4, fixed_abs, tag = 'smem constant byte address 0x4 - core index']
  #allocation1 [shape = 'u32[144,128]{1,0:T(1,128)}', space=vmem, size = 0x12000, scoped, tag = 'internal scratch']
  %s0 = inlined_call_operand.hbm [shape: f32[2,3,8,8,64], index: 0, kind: input, shape index: {}]
  %s1 = inlined_call_operand.vmem [shape: f32[2,36,7,7], index: 1, kind: output, shape index: {}]
  %s2 = sld [smem:[#allocation0]]
  $region41: #{tpu_custom_call.1} parent=0
    _
  %s4 = ssub.s32 1, %s2
  %s5 = scalar_select 0, %s4, %s2
  $region1: #{tpu_custom_call.1} parent=0
    #allocation2 [shape = 'u8[196608]{0}', space=vmem, size = 0x30000, scoped, tag = 'input window, operand 0']
    #allocation3 [shape = 's32[2]{0}', space=sflag, size = 0x8, scoped, tag = 'scoped memory for tpu_custom_call.1']
    %6 = vsyncpa [#allocation3], 0
    %s7 = scalar_lea.sflag [#allocation3], 1
    %8 = vsyncpa %s7, 0
    loop: start=0, step=1, limit=4
    $region2: #{tpu_custom_call.1} parent=1 // loop_pre_header
      _
    $region3: #{tpu_custom_call.1} parent=1 // loop_header
      %s10 = sphi 0, %s14
      %p11 = scmp.ge.s32.totalorder %s10, 4
      %s20 = sphi 0, %s22
      %s23 = sphi 0, %s20
      %s24 = sphi 0, %s23
      %s40 = sphi 0, %s24
      %s46 = sphi 0, %s48
      %s49 = sphi 0, %s46
      %s50 = sphi 0, %s49
      %s66 = sphi 0, %s50
    $region4: #{tpu_custom_call.1} parent=1 // loop_header_branch
      %13 = sbr.rel (%p11) target = $region8
    $region5: #{tpu_custom_call.1} parent=1 // loop_body
      %s15 = ssub.s32 %s10, 1
      %s16 = ssub.s32 %s10, 2
      %s17 = sadd.s32 %s10, 1
      %s18 = ssub.s32 %s10, %s17
      %p19 = scmp.eq.s32.totalorder %s18, 0
      %s21 = sadd.s32 %s20, 1
      %s22 = scalar_select %p19, %s20, %s21
      %p25 = pneg %p19
      %p26 = scmp.eq.s32.totalorder %s10, 1
      %p27 = por %p25, %p26
      %p28 = scmp.ne.s32.totalorder %s20, %s23
      %p29 = scmp.eq.s32.totalorder %s10, 0
      %p30 = por %p28, %p29
      %p31 = scmp.ne.s32.totalorder %s20, %s23
      %p32 = scmp.eq.s32.totalorder %s15, 1
      %p33 = por %p31, %p32
      %p34 = scmp.ne.s32.totalorder %s23, %s24
      %p35 = scmp.eq.s32.totalorder %s15, 0
      %p36 = por %p34, %p35
      %p37 = scmp.ne.s32.totalorder %s23, %s24
      %p38 = scmp.eq.s32.totalorder %s16, 1
      %p39 = por %p37, %p38
      %p41 = scmp.ne.s32.totalorder %s24, %s40
      %p42 = scmp.eq.s32.totalorder %s16, 0
      %p43 = por %p41, %p42
      %s44 = ssub.s32 %s10, %s17
      %p45 = scmp.eq.s32.totalorder %s44, 0
      %s47 = sadd.s32 %s46, 1
      %s48 = scalar_select %p45, %s46, %s47
      %p51 = pneg %p45
      %p52 = scmp.eq.s32.totalorder %s10, 1
      %p53 = por %p51, %p52
      %p54 = scmp.ne.s32.totalorder %s46, %s49
      %p55 = scmp.eq.s32.totalorder %s10, 0
      %p56 = por %p54, %p55
      %p57 = scmp.ne.s32.totalorder %s46, %s49
      %p58 = scmp.eq.s32.totalorder %s15, 1
      %p59 = por %p57, %p58
      %p60 = scmp.ne.s32.totalorder %s49, %s50
      %p61 = scmp.eq.s32.totalorder %s15, 0
      %p62 = por %p60, %p61
      %p63 = scmp.ne.s32.totalorder %s49, %s50
      %p64 = scmp.eq.s32.totalorder %s16, 1
      %p65 = por %p63, %p64
      %p67 = scmp.ne.s32.totalorder %s50, %s66
      %p68 = scmp.eq.s32.totalorder %s16, 0
      %p69 = por %p67, %p68
      %p70 = scmp.le.s32.totalorder 1, %s10
      %p71 = scmp.lt.s32.totalorder %s10, 3
      %p72 = pnand %p70, %p71
      %p73 = pneg %p72
      // Predicated region
      $region9: #{tpu_custom_call.1} parent=5 // pred_check
        _
      $region10: #{tpu_custom_call.1} parent=5 // pred_check_branch
        %75 = sbr.rel (%p72) target = $region12
      $region11: #{tpu_custom_call.1} parent=5 // pred_region
        %s76 = ssub.s32 %s10, 1
      $region12: #{tpu_custom_call.1} parent=5 // pred_fallthru
        _
      %p77 = scmp.lt.s32.totalorder %s10, 2
      // Predicated region
      $region13: #{tpu_custom_call.1} parent=5 // pred_check
        %p78 = pneg %p77
      $region14: #{tpu_custom_call.1} parent=5 // pred_check_branch
        %80 = sbr.rel (%p78) target = $region16
      $region15: #{tpu_custom_call.1} parent=5 // pred_region
        // Predicated region
        $region17: #{tpu_custom_call.1} parent=15 // pred_check
          %p81 = pneg %p30
        $region18: #{tpu_custom_call.1} parent=15 // pred_check_branch
          %83 = sbr.rel (%p81) target = $region20
        $region19: #{tpu_custom_call.1} parent=15 // pred_region
          %s84 = sand.u32 %s20, 1
          %s85 = scalar_lea.sflag [#allocation3], %s84
          %s86 = sand.u32 %s20, 1
          %s87 = smul.addr %s86, 192
          %s88 = scalar_lea.vmem [#allocation2], %s87
          %s90 = ssub.s32 3072, 3072
          %91 = vsyncadd %s85, %s90
          %s92 = smul.addr %s10, 24
          %s93 = smul.addr %s92, 128
          %s94 = scalar_lea.hbm %s0, %s93
          %s95 = sshll.u32 %s88, 4
          %s96 = int_to_ptr.vmem [resolvable:$true] %s95
          %101 = dma.hbm_to_vmem [thread:$0]  %s94, 3072, %s96, %s85, 128, 128, 8
        $region20: #{tpu_custom_call.1} parent=15 // pred_fallthru
          _
      $region16: #{tpu_custom_call.1} parent=5 // pred_fallthru
        _
      %p102 = scmp.le.s32.totalorder 1, %s10
      %p103 = scmp.lt.s32.totalorder %s10, 3
      %p104 = pnand %p102, %p103
      %p105 = pneg %p104
      // Predicated region
      $region21: #{tpu_custom_call.1} parent=5 // pred_check
        _
      $region22: #{tpu_custom_call.1} parent=5 // pred_check_branch
        %107 = sbr.rel (%p104) target = $region24
      $region23: #{tpu_custom_call.1} parent=5 // pred_region
        %s108 = ssub.s32 %s10, 1
        %s109 = sand.u32 %s23, 1
        %s110 = scalar_lea.sflag [#allocation3], %s109
        %s111 = sand.u32 %s23, 1
        %s112 = smul.addr %s111, 192
        %s113 = scalar_lea.vmem [#allocation2], %s112
        // Predicated region
        $region25: #{tpu_custom_call.1} parent=23 // pred_check
          %p114 = pneg %p36
        $region26: #{tpu_custom_call.1} parent=23 // pred_check_branch
          %116 = sbr.rel (%p114) target = $region28
        $region27: #{tpu_custom_call.1} parent=23 // pred_region
          %117 = dma.done %s110, 3072
        $region28: #{tpu_custom_call.1} parent=23 // pred_fallthru
          _
        %s118 = sand.u32 %s23, 1
        %s119 = scalar_lea.sflag [#allocation3], %s118
        %s120 = sand.u32 %s23, 1
        %s121 = smul.addr %s120, 192
        %s122 = scalar_lea.vmem [#allocation2], %s121
        %p123 = pneg %p36
        %p124 = pneg %p33
        %p125 = pneg %p62
        %p126 = pneg %p59
        %p127 = scmp.lt.s32.totalorder %s15, 1
        %s128 = scalar_select %p127, %s15, 1
        %s129 = smul.addr %s128, 36
        %s130 = smul.addr %s129, 8
        %s131 = scalar_lea.vmem %s1, %s130
        %p132 = scmp.lt.s32.totalorder %s15, 1
        %s133 = scalar_select %p132, %s15, 1
        %s134 = smul.addr %s133, 36
        %s135 = smul.addr %s134, 8
        %s136 = scalar_lea.vmem %s1, %s135
        %v137 = vld [vmem:[%s113 + $0x7] sm:$0x1]
        %v138 = vld [vmem:[%s113 + $0xf] sm:$0x1]
        %v139 = vld [vmem:[%s113 + $0x17] sm:$0x1]
        %v140 = vld [vmem:[%s113 + $0x1f] sm:$0x1]
        %v141 = vld [vmem:[%s113 + $0x27] sm:$0x1]
        %v142 = vld [vmem:[%s113 + $0x2f] sm:$0x1]
        %v143 = vld [vmem:[%s113 + $0x37] sm:$0x1]
        %v144 = vld [vmem:[%s113 + $0x3f] sm:$0x1]
        %s145 = scalar_lea.vmem %s113, 64 [#allocation2]
        %v146 = vld [vmem:[%s145 + $0x7] sm:$0x1]
        %v147 = vld [vmem:[%s145 + $0xf] sm:$0x1]
        %v148 = vld [vmem:[%s145 + $0x17] sm:$0x1]
        %v149 = vld [vmem:[%s145 + $0x1f] sm:$0x1]
        %v150 = vld [vmem:[%s145 + $0x27] sm:$0x1]
        %v151 = vld [vmem:[%s145 + $0x2f] sm:$0x1]
        %v152 = vld [vmem:[%s145 + $0x37] sm:$0x1]
        %v153 = vld [vmem:[%s145 + $0x3f] sm:$0x1]
        %v154 = vadd.f32 %v137, %v146
        %v155 = vadd.f32 %v138, %v147
        %v156 = vadd.f32 %v139, %v148
        %v157 = vadd.f32 %v140, %v149
        %v158 = vadd.f32 %v141, %v150
        %v159 = vadd.f32 %v142, %v151
        %v160 = vadd.f32 %v143, %v152
        %v161 = vadd.f32 %v144, %v153
        %s162 = scalar_lea.vmem %s113, 128 [#allocation2]
        %v163 = vld [vmem:[%s162 + $0x7] sm:$0x1]
        %v164 = vld [vmem:[%s162 + $0xf] sm:$0x1]
        %v165 = vld [vmem:[%s162 + $0x17] sm:$0x1]
        %v166 = vld [vmem:[%s162 + $0x1f] sm:$0x1]
        %v167 = vld [vmem:[%s162 + $0x27] sm:$0x1]
        %v168 = vld [vmem:[%s162 + $0x2f] sm:$0x1]
        %v169 = vld [vmem:[%s162 + $0x37] sm:$0x1]
        %v170 = vld [vmem:[%s162 + $0x3f] sm:$0x1]
        %v171 = vadd.f32 %v154, %v163
        %v172 = vadd.f32 %v155, %v164
        %v173 = vadd.f32 %v156, %v165
        %v174 = vadd.f32 %v157, %v166
        %v175 = vadd.f32 %v158, %v167
        %v176 = vadd.f32 %v159, %v168
        %v177 = vadd.f32 %v160, %v169
        %v178 = vadd.f32 %v161, %v170
        %v179 = vld [vmem:[%s113 + $0x6] sm:$0x1]
        %v180 = vld [vmem:[%s113 + $0xe] sm:$0x1]
        %v181 = vld [vmem:[%s113 + $0x16] sm:$0x1]
        %v182 = vld [vmem:[%s113 + $0x1e] sm:$0x1]
        %v183 = vld [vmem:[%s113 + $0x26] sm:$0x1]
        %v184 = vld [vmem:[%s113 + $0x2e] sm:$0x1]
        %v185 = vld [vmem:[%s113 + $0x36] sm:$0x1]
        %v186 = vld [vmem:[%s113 + $0x3e] sm:$0x1]
        %v187 = vld [vmem:[%s145 + $0x6] sm:$0x1]
        %v188 = vld [vmem:[%s145 + $0xe] sm:$0x1]
        %v189 = vld [vmem:[%s145 + $0x16] sm:$0x1]
        %v190 = vld [vmem:[%s145 + $0x1e] sm:$0x1]
        %v191 = vld [vmem:[%s145 + $0x26] sm:$0x1]
        %v192 = vld [vmem:[%s145 + $0x2e] sm:$0x1]
        %v193 = vld [vmem:[%s145 + $0x36] sm:$0x1]
        %v194 = vld [vmem:[%s145 + $0x3e] sm:$0x1]
        %v195 = vadd.f32 %v179, %v187
        %v196 = vadd.f32 %v180, %v188
        %v197 = vadd.f32 %v181, %v189
        %v198 = vadd.f32 %v182, %v190
        %v199 = vadd.f32 %v183, %v191
        %v200 = vadd.f32 %v184, %v192
        %v201 = vadd.f32 %v185, %v193
        %v202 = vadd.f32 %v186, %v194
        %v203 = vld [vmem:[%s162 + $0x6] sm:$0x1]
        %v204 = vld [vmem:[%s162 + $0xe] sm:$0x1]
        %v205 = vld [vmem:[%s162 + $0x16] sm:$0x1]
        %v206 = vld [vmem:[%s162 + $0x1e] sm:$0x1]
        %v207 = vld [vmem:[%s162 + $0x26] sm:$0x1]
        %v208 = vld [vmem:[%s162 + $0x2e] sm:$0x1]
        %v209 = vld [vmem:[%s162 + $0x36] sm:$0x1]
        %v210 = vld [vmem:[%s162 + $0x3e] sm:$0x1]
        %v211 = vadd.f32 %v195, %v203
        %v212 = vadd.f32 %v196, %v204
        %v213 = vadd.f32 %v197, %v205
        %v214 = vadd.f32 %v198, %v206
        %v215 = vadd.f32 %v199, %v207
        %v216 = vadd.f32 %v200, %v208
        %v217 = vadd.f32 %v201, %v209
        %v218 = vadd.f32 %v202, %v210
        %s219 = scalar_lea.vmem %s113, 8 [#allocation2]
        %v220 = vld [vmem:[%s219] sm:$0x1]
        %v221 = vld [vmem:[%s219 + $0x8] sm:$0x1]
        %v222 = vld [vmem:[%s219 + $0x10] sm:$0x1]
        %v223 = vld [vmem:[%s219 + $0x18] sm:$0x1]
        %v224 = vld [vmem:[%s219 + $0x20] sm:$0x1]
        %v225 = vld [vmem:[%s219 + $0x28] sm:$0x1]
        %v226 = vld [vmem:[%s219 + $0x30] sm:$0x1]
        %s227 = scalar_lea.vmem %s113, 72 [#allocation2]
        %v228 = vld [vmem:[%s227] sm:$0x1]
        %v229 = vld [vmem:[%s227 + $0x8] sm:$0x1]
        %v230 = vld [vmem:[%s227 + $0x10] sm:$0x1]
        %v231 = vld [vmem:[%s227 + $0x18] sm:$0x1]
        %v232 = vld [vmem:[%s227 + $0x20] sm:$0x1]
        %v233 = vld [vmem:[%s227 + $0x28] sm:$0x1]
        %v234 = vld [vmem:[%s227 + $0x30] sm:$0x1]
        %v235 = vadd.f32 %v220, %v228
        %v236 = vadd.f32 %v221, %v229
        %v237 = vadd.f32 %v222, %v230
        %v238 = vadd.f32 %v223, %v231
        %v239 = vadd.f32 %v224, %v232
        %v240 = vadd.f32 %v225, %v233
        %v241 = vadd.f32 %v226, %v234
        %s242 = scalar_lea.vmem %s113, 136 [#allocation2]
        %v243 = vld [vmem:[%s242] sm:$0x1]
        %v244 = vld [vmem:[%s242 + $0x8] sm:$0x1]
        %v245 = vld [vmem:[%s242 + $0x10] sm:$0x1]
        %v246 = vld [vmem:[%s242 + $0x18] sm:$0x1]
        %v247 = vld [vmem:[%s242 + $0x20] sm:$0x1]
        %v248 = vld [vmem:[%s242 + $0x28] sm:$0x1]
        %v249 = vld [vmem:[%s242 + $0x30] sm:$0x1]
        %v250 = vadd.f32 %v235, %v243
        %v251 = vadd.f32 %v236, %v244
        %v252 = vadd.f32 %v237, %v245
        %v253 = vadd.f32 %v238, %v246
        %v254 = vadd.f32 %v239, %v247
        %v255 = vadd.f32 %v240, %v248
        %v256 = vadd.f32 %v241, %v249
        %v264 = vrot.slane %v251, 7
        %vm265 = vcmask 1041409
        %v266 = vsel %vm265, %v264, %v250
        %v267 = vrot.slane %v252, 6
        %vm268 = vcmask 1042434
        %v269 = vsel %vm268, %v267, %v266
        %v270 = vrot.slane %v253, 5
        %vm271 = vcmask 1043459
        %v272 = vsel %vm271, %v270, %v269
        %v273 = vrot.slane %v254, 4
        %vm274 = vcmask 1044484
        %v275 = vsel %vm274, %v273, %v272
        %v276 = vrot.slane %v255, 3
        %vm277 = vcmask 1045509
        %v278 = vsel %vm277, %v276, %v275
        %v279 = vrot.slane %v256, 2
        %vm280 = vcmask 1046534
        %v281 = vsel %vm280, %v279, %v278
        %vm283 = vcmask 1046528
        %v284 = vsel %vm283, %v281, 0.0
        %v293 = vrot.slane %v212, 7
        %v294 = vsel %vm265, %v293, %v211
        %v295 = vrot.slane %v213, 6
        %v296 = vsel %vm268, %v295, %v294
        %v297 = vrot.slane %v214, 5
        %v298 = vsel %vm271, %v297, %v296
        %v299 = vrot.slane %v215, 4
        %v300 = vsel %vm274, %v299, %v298
        %v301 = vrot.slane %v216, 3
        %v302 = vsel %vm277, %v301, %v300
        %v303 = vrot.slane %v217, 2
        %v304 = vsel %vm280, %v303, %v302
        %v305 = vrot.slane %v218, 1
        %vm306 = vcmask 1047559
        %v307 = vsel %vm306, %v305, %v304
        %v309 = vsub.f32 %v284, %v307
        %v310 = vlaneseq
        %v311 = vshrl.u32 %v310, 7
        %v312 = vadd.s32 %v311, 8
        %v313 = vadd.s32 %v311, 16
        %v314 = vadd.s32 %v311, 24
        %v315 = vadd.s32 %v311, 32
        %v316 = vadd.s32 %v311, 40
        %v317 = vadd.s32 %v311, 48
        %v318 = vadd.s32 %v311, 56
        %v319 = vlaneseq
        %v320 = vand.u32 %v319, 127
        %v321 = vmul.u32 %v320, 8
        %v322 = vadd.s32 %v321, 7
        %vm323 = vcmp.eq.s32.totalorder %v311, %v322
        %vm324 = vcmp.eq.s32.totalorder %v312, %v322
        %vm325 = vcmp.eq.s32.totalorder %v313, %v322
        %vm326 = vcmp.eq.s32.totalorder %v314, %v322
        %vm327 = vcmp.eq.s32.totalorder %v315, %v322
        %vm328 = vcmp.eq.s32.totalorder %v316, %v322
        %vm329 = vcmp.eq.s32.totalorder %v317, %v322
        %vm330 = vcmp.eq.s32.totalorder %v318, %v322
        %v331 = vsel %vm323, 1, 0
        %v332 = vsel %vm324, 1, 0
        %v333 = vsel %vm325, 1, 0
        %v334 = vsel %vm326, 1, 0
        %v335 = vsel %vm327, 1, 0
        %v336 = vsel %vm328, 1, 0
        %v337 = vsel %vm329, 1, 0
        %v338 = vsel %vm330, 1, 0
        %v339 = vcvt.s32.f32 %v331
        %v340 = vcvt.s32.f32 %v332
        %v341 = vcvt.s32.f32 %v333
        %v342 = vcvt.s32.f32 %v334
        %v343 = vcvt.s32.f32 %v335
        %v344 = vcvt.s32.f32 %v336
        %v345 = vcvt.s32.f32 %v337
        %v346 = vcvt.s32.f32 %v338
        %v347 = vadd.s32 %v322, 1
        %vm348 = vcmp.eq.s32.totalorder %v311, %v347
        %vm349 = vcmp.eq.s32.totalorder %v312, %v347
        %vm350 = vcmp.eq.s32.totalorder %v313, %v347
        %vm351 = vcmp.eq.s32.totalorder %v314, %v347
        %vm352 = vcmp.eq.s32.totalorder %v315, %v347
        %vm353 = vcmp.eq.s32.totalorder %v316, %v347
        %vm354 = vcmp.eq.s32.totalorder %v317, %v347
        %vm355 = vcmp.eq.s32.totalorder %v318, %v347
        %v356 = vsel %vm348, 1, 0
        %v357 = vsel %vm349, 1, 0
        %v358 = vsel %vm350, 1, 0
        %v359 = vsel %vm351, 1, 0
        %v360 = vsel %vm352, 1, 0
        %v361 = vsel %vm353, 1, 0
        %v362 = vsel %vm354, 1, 0
        %v363 = vsel %vm355, 1, 0
        %v364 = vcvt.s32.f32 %v356
        %v365 = vcvt.s32.f32 %v357
        %v366 = vcvt.s32.f32 %v358
        %v367 = vcvt.s32.f32 %v359
        %v368 = vcvt.s32.f32 %v360
        %v369 = vcvt.s32.f32 %v361
        %v370 = vcvt.s32.f32 %v362
        %v371 = vcvt.s32.f32 %v363
        %v372 = vsub.s32 %v322, 1
        %vm373 = vcmp.eq.s32.totalorder %v311, %v372
        %vm374 = vcmp.eq.s32.totalorder %v312, %v372
        %vm375 = vcmp.eq.s32.totalorder %v313, %v372
        %vm376 = vcmp.eq.s32.totalorder %v314, %v372
        %vm377 = vcmp.eq.s32.totalorder %v315, %v372
        %vm378 = vcmp.eq.s32.totalorder %v316, %v372
        %vm379 = vcmp.eq.s32.totalorder %v317, %v372
        %vm380 = vcmp.eq.s32.totalorder %v318, %v372
        %v381 = vsel %vm373, 1, 0
        %v382 = vsel %vm374, 1, 0
        %v383 = vsel %vm375, 1, 0
        %v384 = vsel %vm376, 1, 0
        %v385 = vsel %vm377, 1, 0
        %v386 = vsel %vm378, 1, 0
        %v387 = vsel %vm379, 1, 0
        %v388 = vsel %vm380, 1, 0
        %v389 = vcvt.s32.f32 %v381
        %v390 = vcvt.s32.f32 %v382
        %v391 = vcvt.s32.f32 %v383
        %v392 = vcvt.s32.f32 %v384
        %v393 = vcvt.s32.f32 %v385
        %v394 = vcvt.s32.f32 %v386
        %v395 = vcvt.s32.f32 %v387
        %v396 = vcvt.s32.f32 %v388
        %v397 = vsub.f32 %v364, %v389
        %v398 = vsub.f32 %v365, %v390
        %v399 = vsub.f32 %v366, %v391
        %v400 = vsub.f32 %v367, %v392
        %v401 = vsub.f32 %v368, %v393
        %v402 = vsub.f32 %v369, %v394
        %v403 = vsub.f32 %v370, %v395
        %v404 = vsub.f32 %v371, %v396
        %vm405 = vcmask 523264
        %v407 = vsel %vm405, %v309, 0
        %409 = vmatprep.subr.mxu0 0.0
        %410 = vmatpush1.msra.mxu0 %v339
        %411 = vmatprep.subr.mxu0 0.0
        %412 = vmatpush1.msra.mxu0 %v340
        %413 = vmatprep.subr.mxu0 0.0
        %414 = vmatpush1.msra.mxu0 %v341
        %415 = vmatprep.subr.mxu0 0.0
        %416 = vmatpush1.msra.mxu0 %v342
        %417 = vmatprep.subr.mxu0 0.0
        %418 = vmatpush1.msra.mxu0 %v343
        %419 = vmatprep.subr.mxu0 0.0
        %420 = vmatpush1.msra.mxu0 %v344
        %421 = vmatprep.subr.mxu0 0.0
        %422 = vmatpush1.msra.mxu0 %v345
        %423 = vmatprep.subr.mxu0 0.0
        %424 = vmatpush1.msra.mxu0 %v346
        %425 = vmatprep.subr.mxu0 0.0
        %426 = vmatpush1.msra.mxu0 0.0
        %427 = vmatprep.subr.mxu0 0.0
        %428 = vmatpush1.msra.mxu0 0.0
        %429 = vmatprep.subr.mxu0 0.0
        %430 = vmatpush1.msra.mxu0 0.0
        %431 = vmatprep.subr.mxu0 0.0
        %432 = vmatpush1.msra.mxu0 0.0
        %433 = vmatprep.subr.mxu0 0.0
        %434 = vmatpush1.msra.mxu0 0.0
        %435 = vmatprep.subr.mxu0 0.0
        %436 = vmatpush1.msra.mxu0 0.0
        %437 = vmatprep.subr.mxu0 0.0
        %438 = vmatpush1.msra.mxu0 0.0
        %439 = vmatprep.subr.mxu0 0.0
        %440 = vmatpush1.msra.mxu0 0.0
        %441 = vmatprep.subr.mxu0 0.0
        %442 = vmatpush1.msra.mxu0 0.0
        %443 = vmatprep.subr.mxu0 0.0
        %444 = vmatpush1.msra.mxu0 0.0
        %445 = vmatprep.subr.mxu0 0.0
        %446 = vmatpush1.msra.mxu0 0.0
        %447 = vmatprep.subr.mxu0 0.0
        %448 = vmatpush1.msra.mxu0 0.0
        %449 = vmatprep.subr.mxu0 0.0
        %450 = vmatpush1.msra.mxu0 0.0
        %451 = vmatprep.subr.mxu0 0.0
        %452 = vmatpush1.msra.mxu0 0.0
        %453 = vmatprep.subr.mxu0 0.0
        %454 = vmatpush1.msra.mxu0 0.0
        %455 = vmatprep.subr.mxu0 0.0
        %456 = vmatpush1.msra.mxu0 0.0
        %457 = vmatprep.subr.mxu0 0.0
        %458 = vmatpush1.msra.mxu0 0.0
        %459 = vmatprep.subr.mxu0 0.0
        %460 = vmatpush1.msra.mxu0 0.0
        %461 = vmatprep.subr.mxu0 0.0
        %462 = vmatpush1.msra.mxu0 0.0
        %463 = vmatprep.subr.mxu0 0.0
        %464 = vmatpush1.msra.mxu0 0.0
        %465 = vmatprep.subr.mxu0 0.0
        %466 = vmatpush1.msra.mxu0 0.0
        %467 = vmatprep.subr.mxu0 0.0
        %468 = vmatpush1.msra.mxu0 0.0
        %469 = vmatprep.subr.mxu0 0.0
        %470 = vmatpush1.msra.mxu0 0.0
        %471 = vmatprep.subr.mxu0 0.0
        %472 = vmatpush1.msra.mxu0 0.0
        %473 = vmatprep.mubr.f32.mxu0 0.0
        %474 = vmatmul.mubr.f32.gmra.mrb[0].mxu0 %v407
        %v475 = vpop.f32.mrb[0].mxu0
        %v476 = vadd.f32 0.0, %v475
        %v477 = vpop.f32.mrb[0].mxu0
        %478 = vdwg.mxu0
        %v487 = vrot.slane %v172, 7
        %v488 = vsel %vm265, %v487, %v171
        %v489 = vrot.slane %v173, 6
        %v490 = vsel %vm268, %v489, %v488
        %v491 = vrot.slane %v174, 5
        %v492 = vsel %vm271, %v491, %v490
        %v493 = vrot.slane %v175, 4
        %v494 = vsel %vm274, %v493, %v492
        %v495 = vrot.slane %v176, 3
        %v496 = vsel %vm277, %v495, %v494
        %v497 = vrot.slane %v177, 2
        %v498 = vsel %vm280, %v497, %v496
        %v499 = vrot.slane %v178, 1
        %v500 = vsel %vm306, %v499, %v498
        %v501 = vsel %vm405, %v500, 0
        %503 = vmatprep.subr.mxu0 0.0
        %504 = vmatpush1.msra.mxu0 %v397
        %505 = vmatprep.subr.mxu0 0.0
        %506 = vmatpush1.msra.mxu0 %v398
        %507 = vmatprep.subr.mxu0 0.0
        %508 = vmatpush1.msra.mxu0 %v399
        %509 = vmatprep.subr.mxu0 0.0
        %510 = vmatpush1.msra.mxu0 %v400
        %511 = vmatprep.subr.mxu0 0.0
        %512 = vmatpush1.msra.mxu0 %v401
        %513 = vmatprep.subr.mxu0 0.0
        %514 = vmatpush1.msra.mxu0 %v402
        %515 = vmatprep.subr.mxu0 0.0
        %516 = vmatpush1.msra.mxu0 %v403
        %517 = vmatprep.subr.mxu0 0.0
        %518 = vmatpush1.msra.mxu0 %v404
        %519 = vmatprep.subr.mxu0 0.0
        %520 = vmatpush1.msra.mxu0 0.0
        %521 = vmatprep.subr.mxu0 0.0
        %522 = vmatpush1.msra.mxu0 0.0
        %523 = vmatprep.subr.mxu0 0.0
        %524 = vmatpush1.msra.mxu0 0.0
        %525 = vmatprep.subr.mxu0 0.0
        %526 = vmatpush1.msra.mxu0 0.0
        %527 = vmatprep.subr.mxu0 0.0
        %528 = vmatpush1.msra.mxu0 0.0
        %529 = vmatprep.subr.mxu0 0.0
        %530 = vmatpush1.msra.mxu0 0.0
        %531 = vmatprep.subr.mxu0 0.0
        %532 = vmatpush1.msra.mxu0 0.0
        %533 = vmatprep.subr.mxu0 0.0
        %534 = vmatpush1.msra.mxu0 0.0
        %535 = vmatprep.subr.mxu0 0.0
        %536 = vmatpush1.msra.mxu0 0.0
        %537 = vmatprep.subr.mxu0 0.0
        %538 = vmatpush1.msra.mxu0 0.0
        %539 = vmatprep.subr.mxu0 0.0
        %540 = vmatpush1.msra.mxu0 0.0
        %541 = vmatprep.subr.mxu0 0.0
        %542 = vmatpush1.msra.mxu0 0.0
        %543 = vmatprep.subr.mxu0 0.0
        %544 = vmatpush1.msra.mxu0 0.0
        %545 = vmatprep.subr.mxu0 0.0
        %546 = vmatpush1.msra.mxu0 0.0
        %547 = vmatprep.subr.mxu0 0.0
        %548 = vmatpush1.msra.mxu0 0.0
        %549 = vmatprep.subr.mxu0 0.0
        %550 = vmatpush1.msra.mxu0 0.0
        %551 = vmatprep.subr.mxu0 0.0
        %552 = vmatpush1.msra.mxu0 0.0
        %553 = vmatprep.subr.mxu0 0.0
        %554 = vmatpush1.msra.mxu0 0.0
        %555 = vmatprep.subr.mxu0 0.0
        %556 = vmatpush1.msra.mxu0 0.0
        %557 = vmatprep.subr.mxu0 0.0
        %558 = vmatpush1.msra.mxu0 0.0
        %559 = vmatprep.subr.mxu0 0.0
        %560 = vmatpush1.msra.mxu0 0.0
        %561 = vmatprep.subr.mxu0 0.0
        %562 = vmatpush1.msra.mxu0 0.0
        %563 = vmatprep.subr.mxu0 0.0
        %564 = vmatpush1.msra.mxu0 0.0
        %565 = vmatprep.subr.mxu0 0.0
        %566 = vmatpush1.msra.mxu0 0.0
        %567 = vmatprep.mubr.f32.mxu0 0.0
        %568 = vmatmul.mubr.f32.gmra.mrb[0].mxu0 %v501
        %v569 = vpop.f32.mrb[0].mxu0
        %v570 = vadd.f32 0.0, %v569
        %v571 = vpop.f32.mrb[0].mxu0
        %572 = vdwg.mxu0
        %v573 = vmul.f32 %v476, %v476
        %v574 = vmul.f32 %v570, %v570
        %v575 = vadd.f32 %v573, %v574
        %v576 = vadd.f32 %v575, 1e-06
        %v577 = vrsqrt.pop %v576
        %v578 = vmul.f32 %v576, %v577
        %vm579 = vcmp.eq.f32.partialorder %v576, inf
        %v580 = vsel %vm579, %v576, %v578
        %vm581 = vcmp.eq.f32.partialorder %v576, 0.0
        %v582 = vand.u32 %v576, 2147483648
        %v583 = vsel %vm581, %v582, %v580
        %v584 = vadd.f32 %v476, 1e-09
        %v585 = vrcp.pop %v584
        %v586 = vmul.f32 %v570, %v585
        %v587 = vand.u32 2147483647, %v586
        %vm588 = vcmp.gt.f32.partialorder %v587, 2.4142137
        %vm589 = vcmp.gt.f32.partialorder %v587, 0.41421357
        %vm590 = vmxor %vm588, 1
        %vm591 = vmand %vm589, %vm590
        %v592 = vmax.f32 %v587, 1e-30
        %v593 = vrcp.pop %v592
        %v594 = vmul.f32 -1.0, %v593
        %v595 = vsub.f32 %v587, 1.0
        %v596 = vadd.f32 %v587, 1.0
        %v597 = vrcp.pop %v596
        %v598 = vmul.f32 %v595, %v597
        %v599 = vsel %vm591, %v598, %v587
        %v600 = vsel %vm588, %v594, %v599
        %v601 = vsel %vm591, 0.7853982, 0.0
        %v602 = vsel %vm588, 1.5707964, %v601
        %v603 = vmul.f32 %v600, %v600
        %v604 = vmul.f32 %v603, 0.080537446
        %v605 = vsub.f32 %v604, 0.13877685
        %v606 = vmul.f32 %v605, %v603
        %v607 = vadd.f32 %v606, 0.19977711
        %v608 = vmul.f32 %v607, %v603
        %v609 = vsub.f32 %v608, 0.3333295
        %v610 = vmul.f32 %v609, %v603
        %v611 = vmul.f32 %v610, %v600
        %v612 = vadd.f32 %v611, %v600
        %v613 = vadd.f32 %v602, %v612
        %v614 = vmul.f32 %v613, 57.29578
        %v615 = vmul.f32 %v614, 0.05
        %v616 = vsub.f32 %v615, 0.5
        %v617 = vfloor.f32 %v616
        %v618 = vadd.f32 %v617, 1.5
        %v619 = vmul.f32 %v618, 20.0
        %v620 = vsub.f32 %v619, %v614
        %v621 = vmul.f32 %v620, 0.05
        %v622 = vmul.f32 %v583, %v621
        %v623 = vsub.f32 %v583, %v622
        %v624 = vcvt.f32.s32.to.zero.pseudo %v617
        %vm625 = vcmp.lt.s32.totalorder %v624, 0
        %v626 = vadd.s32 %v624, 9
        %v627 = vsel %vm625, %v626, %v624
        %v628 = vadd.s32 %v624, 1
        %vm629 = vcmp.eq.s32.totalorder %v627, 0
        %vm630 = vcmp.eq.s32.totalorder %v627, 1
        %vm631 = vcmp.eq.s32.totalorder %v627, 2
        %vm632 = vcmp.eq.s32.totalorder %v627, 3
        %vm633 = vcmp.eq.s32.totalorder %v627, 4
        %vm634 = vcmp.eq.s32.totalorder %v627, 5
        %vm635 = vcmp.eq.s32.totalorder %v627, 6
        %vm636 = vcmp.eq.s32.totalorder %v627, 7
        %vm637 = vcmp.eq.s32.totalorder %v627, 8
        %v638 = vsel %vm629, 1, 0
        %v639 = vsel %vm630, 1, 0
        %v640 = vsel %vm631, 1, 0
        %v641 = vsel %vm632, 1, 0
        %v642 = vsel %vm633, 1, 0
        %v643 = vsel %vm634, 1, 0
        %v644 = vsel %vm635, 1, 0
        %v645 = vsel %vm636, 1, 0
        %v646 = vsel %vm637, 1, 0
        %v647 = vcvt.s32.f32 %v638
        %v648 = vcvt.s32.f32 %v639
        %v649 = vcvt.s32.f32 %v640
        %v650 = vcvt.s32.f32 %v641
        %v651 = vcvt.s32.f32 %v642
        %v652 = vcvt.s32.f32 %v643
        %v653 = vcvt.s32.f32 %v644
        %v654 = vcvt.s32.f32 %v645
        %v655 = vcvt.s32.f32 %v646
        %v656 = vmul.f32 %v622, %v647
        %v657 = vmul.f32 %v622, %v648
        %v658 = vmul.f32 %v622, %v649
        %v659 = vmul.f32 %v622, %v650
        %v660 = vmul.f32 %v622, %v651
        %v661 = vmul.f32 %v622, %v652
        %v662 = vmul.f32 %v622, %v653
        %v663 = vmul.f32 %v622, %v654
        %v664 = vmul.f32 %v622, %v655
        %vm665 = vcmp.eq.s32.totalorder %v628, 0
        %vm666 = vcmp.eq.s32.totalorder %v628, 1
        %vm667 = vcmp.eq.s32.totalorder %v628, 2
        %vm668 = vcmp.eq.s32.totalorder %v628, 3
        %vm669 = vcmp.eq.s32.totalorder %v628, 4
        %vm670 = vcmp.eq.s32.totalorder %v628, 5
        %vm671 = vcmp.eq.s32.totalorder %v628, 6
        %vm672 = vcmp.eq.s32.totalorder %v628, 7
        %vm673 = vcmp.eq.s32.totalorder %v628, 8
        %v674 = vsel %vm665, 1, 0
        %v675 = vsel %vm666, 1, 0
        %v676 = vsel %vm667, 1, 0
        %v677 = vsel %vm668, 1, 0
        %v678 = vsel %vm669, 1, 0
        %v679 = vsel %vm670, 1, 0
        %v680 = vsel %vm671, 1, 0
        %v681 = vsel %vm672, 1, 0
        %v682 = vsel %vm673, 1, 0
        %v683 = vcvt.s32.f32 %v674
        %v684 = vcvt.s32.f32 %v675
        %v685 = vcvt.s32.f32 %v676
        %v686 = vcvt.s32.f32 %v677
        %v687 = vcvt.s32.f32 %v678
        %v688 = vcvt.s32.f32 %v679
        %v689 = vcvt.s32.f32 %v680
        %v690 = vcvt.s32.f32 %v681
        %v691 = vcvt.s32.f32 %v682
        %v692 = vmul.f32 %v623, %v683
        %v693 = vmul.f32 %v623, %v684
        %v694 = vmul.f32 %v623, %v685
        %v695 = vmul.f32 %v623, %v686
        %v696 = vmul.f32 %v623, %v687
        %v697 = vmul.f32 %v623, %v688
        %v698 = vmul.f32 %v623, %v689
        %v699 = vmul.f32 %v623, %v690
        %v700 = vmul.f32 %v623, %v691
        %v701 = vadd.f32 %v656, %v692
        %v702 = vadd.f32 %v657, %v693
        %v703 = vadd.f32 %v658, %v694
        %v704 = vadd.f32 %v659, %v695
        %v705 = vadd.f32 %v660, %v696
        %v706 = vadd.f32 %v661, %v697
        %v707 = vadd.f32 %v662, %v698
        %v708 = vadd.f32 %v663, %v699
        %v709 = vadd.f32 %v664, %v700
        %719 = vrot.lane.b32.xlu0 %v701, 127
        %v720 = vpop.permute.xlu0 %719
        %721 = vrot.lane.b32.xlu0 %v702, 127
        %v722 = vpop.permute.xlu0 %721
        %723 = vrot.lane.b32.xlu0 %v703, 127
        %v724 = vpop.permute.xlu0 %723
        %725 = vrot.lane.b32.xlu0 %v704, 127
        %v726 = vpop.permute.xlu0 %725
        %727 = vrot.lane.b32.xlu0 %v705, 127
        %v728 = vpop.permute.xlu0 %727
        %729 = vrot.lane.b32.xlu0 %v706, 127
        %v730 = vpop.permute.xlu0 %729
        %731 = vrot.lane.b32.xlu0 %v707, 127
        %v732 = vpop.permute.xlu0 %731
        %733 = vrot.lane.b32.xlu0 %v708, 127
        %v734 = vpop.permute.xlu0 %733
        %735 = vrot.lane.b32.xlu0 %v709, 127
        %v736 = vpop.permute.xlu0 %735
        %v746 = vrot.slane %v701, 1
        %v747 = vrot.slane %v702, 1
        %v748 = vrot.slane %v703, 1
        %v749 = vrot.slane %v704, 1
        %v750 = vrot.slane %v705, 1
        %v751 = vrot.slane %v706, 1
        %v752 = vrot.slane %v707, 1
        %v753 = vrot.slane %v708, 1
        %v754 = vrot.slane %v709, 1
        %764 = vrot.lane.b32.xlu0 %v746, 127
        %v765 = vpop.permute.xlu0 %764
        %766 = vrot.lane.b32.xlu0 %v747, 127
        %v767 = vpop.permute.xlu0 %766
        %768 = vrot.lane.b32.xlu0 %v748, 127
        %v769 = vpop.permute.xlu0 %768
        %770 = vrot.lane.b32.xlu0 %v749, 127
        %v771 = vpop.permute.xlu0 %770
        %772 = vrot.lane.b32.xlu0 %v750, 127
        %v773 = vpop.permute.xlu0 %772
        %774 = vrot.lane.b32.xlu0 %v751, 127
        %v775 = vpop.permute.xlu0 %774
        %776 = vrot.lane.b32.xlu0 %v752, 127
        %v777 = vpop.permute.xlu0 %776
        %778 = vrot.lane.b32.xlu0 %v753, 127
        %v779 = vpop.permute.xlu0 %778
        %780 = vrot.lane.b32.xlu0 %v754, 127
        %v781 = vpop.permute.xlu0 %780
        %v791 = vmul.f32 %v701, %v701
        %v792 = vmul.f32 %v702, %v702
        %v793 = vmul.f32 %v703, %v703
        %v794 = vmul.f32 %v704, %v704
        %v795 = vmul.f32 %v705, %v705
        %v796 = vmul.f32 %v706, %v706
        %v797 = vmul.f32 %v707, %v707
        %v798 = vmul.f32 %v708, %v708
        %v799 = vmul.f32 %v709, %v709
        %v800 = vmul.f32 %v720, %v720
        %v801 = vmul.f32 %v722, %v722
        %v802 = vmul.f32 %v724, %v724
        %v803 = vmul.f32 %v726, %v726
        %v804 = vmul.f32 %v728, %v728
        %v805 = vmul.f32 %v730, %v730
        %v806 = vmul.f32 %v732, %v732
        %v807 = vmul.f32 %v734, %v734
        %v808 = vmul.f32 %v736, %v736
        %v809 = vmul.f32 %v746, %v746
        %v810 = vmul.f32 %v747, %v747
        %v811 = vmul.f32 %v748, %v748
        %v812 = vmul.f32 %v749, %v749
        %v813 = vmul.f32 %v750, %v750
        %v814 = vmul.f32 %v751, %v751
        %v815 = vmul.f32 %v752, %v752
        %v816 = vmul.f32 %v753, %v753
        %v817 = vmul.f32 %v754, %v754
        %v818 = vmul.f32 %v765, %v765
        %v819 = vmul.f32 %v767, %v767
        %v820 = vmul.f32 %v769, %v769
        %v821 = vmul.f32 %v771, %v771
        %v822 = vmul.f32 %v773, %v773
        %v823 = vmul.f32 %v775, %v775
        %v824 = vmul.f32 %v777, %v777
        %v825 = vmul.f32 %v779, %v779
        %v826 = vmul.f32 %v781, %v781
        %vm827 = vcmask 55296
        %v828 = vsel %vm827, %v791, 0.0
        %v829 = vsel %vm827, %v792, 0.0
        %v830 = vadd.f32 %v828, %v829
        %v831 = vsel %vm827, %v793, 0.0
        %v832 = vadd.f32 %v830, %v831
        %v833 = vsel %vm827, %v794, 0.0
        %v834 = vadd.f32 %v832, %v833
        %v835 = vsel %vm827, %v795, 0.0
        %v836 = vadd.f32 %v834, %v835
        %v837 = vsel %vm827, %v796, 0.0
        %v838 = vadd.f32 %v836, %v837
        %v839 = vsel %vm827, %v797, 0.0
        %v840 = vadd.f32 %v838, %v839
        %v841 = vsel %vm827, %v798, 0.0
        %v842 = vadd.f32 %v840, %v841
        %v843 = vsel %vm827, %v799, 0.0
        %v844 = vadd.f32 %v842, %v843
        %v845 = vsel %vm827, %v800, 0.0
        %v846 = vadd.f32 %v844, %v845
        %v847 = vsel %vm827, %v801, 0.0
        %v848 = vadd.f32 %v846, %v847
        %v849 = vsel %vm827, %v802, 0.0
        %v850 = vadd.f32 %v848, %v849
        %v851 = vsel %vm827, %v803, 0.0
        %v852 = vadd.f32 %v850, %v851
        %v853 = vsel %vm827, %v804, 0.0
        %v854 = vadd.f32 %v852, %v853
        %v855 = vsel %vm827, %v805, 0.0
        %v856 = vadd.f32 %v854, %v855
        %v857 = vsel %vm827, %v806, 0.0
        %v858 = vadd.f32 %v856, %v857
        %v859 = vsel %vm827, %v807, 0.0
        %v860 = vadd.f32 %v858, %v859
        %v861 = vsel %vm827, %v808, 0.0
        %v862 = vadd.f32 %v860, %v861
        %v863 = vsel %vm827, %v809, 0.0
        %v864 = vadd.f32 %v862, %v863
        %v865 = vsel %vm827, %v810, 0.0
        %v866 = vadd.f32 %v864, %v865
        %v867 = vsel %vm827, %v811, 0.0
        %v868 = vadd.f32 %v866, %v867
        %v869 = vsel %vm827, %v812, 0.0
        %v870 = vadd.f32 %v868, %v869
        %v871 = vsel %vm827, %v813, 0.0
        %v872 = vadd.f32 %v870, %v871
        %v873 = vsel %vm827, %v814, 0.0
        %v874 = vadd.f32 %v872, %v873
        %v875 = vsel %vm827, %v815, 0.0
        %v876 = vadd.f32 %v874, %v875
        %v877 = vsel %vm827, %v816, 0.0
        %v878 = vadd.f32 %v876, %v877
        %v879 = vsel %vm827, %v817, 0.0
        %v880 = vadd.f32 %v878, %v879
        %v881 = vsel %vm827, %v818, 0.0
        %v882 = vadd.f32 %v880, %v881
        %v883 = vsel %vm827, %v819, 0.0
        %v884 = vadd.f32 %v882, %v883
        %v885 = vsel %vm827, %v820, 0.0
        %v886 = vadd.f32 %v884, %v885
        %v887 = vsel %vm827, %v821, 0.0
        %v888 = vadd.f32 %v886, %v887
        %v889 = vsel %vm827, %v822, 0.0
        %v890 = vadd.f32 %v888, %v889
        %v891 = vsel %vm827, %v823, 0.0
        %v892 = vadd.f32 %v890, %v891
        %v893 = vsel %vm827, %v824, 0.0
        %v894 = vadd.f32 %v892, %v893
        %v895 = vsel %vm827, %v825, 0.0
        %v896 = vadd.f32 %v894, %v895
        %v897 = vsel %vm827, %v826, 0.0
        %v898 = vadd.f32 %v896, %v897
        %v899 = vrsqrt.pop %v898
        %v900 = vmul.f32 %v898, %v899
        %vm901 = vcmp.eq.f32.partialorder %v898, inf
        %v902 = vsel %vm901, %v898, %v900
        %vm903 = vcmp.eq.f32.partialorder %v898, 0.0
        %v904 = vand.u32 %v898, 2147483648
        %v905 = vsel %vm903, %v904, %v902
        %v906 = vadd.f32 %v905, 1e-09
        %v907 = vrcp.pop %v906
        %v908 = vmul.f32 1.0, %v907
        %v909 = vmul.f32 %v701, %v908
        %v910 = vmul.f32 %v702, %v908
        %v911 = vmul.f32 %v703, %v908
        %v912 = vmul.f32 %v704, %v908
        %v913 = vmul.f32 %v705, %v908
        %v914 = vmul.f32 %v706, %v908
        %v915 = vmul.f32 %v707, %v908
        %v916 = vmul.f32 %v708, %v908
        %v917 = vmul.f32 %v709, %v908
        %v918 = vmul.f32 %v720, %v908
        %v919 = vmul.f32 %v722, %v908
        %v920 = vmul.f32 %v724, %v908
        %v921 = vmul.f32 %v726, %v908
        %v922 = vmul.f32 %v728, %v908
        %v923 = vmul.f32 %v730, %v908
        %v924 = vmul.f32 %v732, %v908
        %v925 = vmul.f32 %v734, %v908
        %v926 = vmul.f32 %v736, %v908
        %v927 = vmul.f32 %v746, %v908
        %v928 = vmul.f32 %v747, %v908
        %v929 = vmul.f32 %v748, %v908
        %v930 = vmul.f32 %v749, %v908
        %v931 = vmul.f32 %v750, %v908
        %v932 = vmul.f32 %v751, %v908
        %v933 = vmul.f32 %v752, %v908
        %v934 = vmul.f32 %v753, %v908
        %v935 = vmul.f32 %v754, %v908
        %v936 = vmul.f32 %v765, %v908
        %v937 = vmul.f32 %v767, %v908
        %v938 = vmul.f32 %v769, %v908
        %v939 = vmul.f32 %v771, %v908
        %v940 = vmul.f32 %v773, %v908
        %v941 = vmul.f32 %v775, %v908
        %v942 = vmul.f32 %v777, %v908
        %v943 = vmul.f32 %v779, %v908
        %v944 = vmul.f32 %v781, %v908
        %945 = vst.msk [vmem:[%s136] sm:$0x7f] %vm827, %v909
        %946 = vst.msk [vmem:[%s136 + $0x8] sm:$0x7f] %vm827, %v910
        %947 = vst.msk [vmem:[%s136 + $0x10] sm:$0x7f] %vm827, %v911
        %948 = vst.msk [vmem:[%s136 + $0x18] sm:$0x7f] %vm827, %v912
        %949 = vst.msk [vmem:[%s136 + $0x20] sm:$0x7f] %vm827, %v913
        %950 = vst.msk [vmem:[%s136 + $0x28] sm:$0x7f] %vm827, %v914
        %951 = vst.msk [vmem:[%s136 + $0x30] sm:$0x7f] %vm827, %v915
        %952 = vst.msk [vmem:[%s136 + $0x38] sm:$0x7f] %vm827, %v916
        %953 = vst.msk [vmem:[%s136 + $0x40] sm:$0x7f] %vm827, %v917
        %954 = vst.msk [vmem:[%s136 + $0x48] sm:$0x7f] %vm827, %v918
        %955 = vst.msk [vmem:[%s136 + $0x50] sm:$0x7f] %vm827, %v919
        %956 = vst.msk [vmem:[%s136 + $0x58] sm:$0x7f] %vm827, %v920
        %957 = vst.msk [vmem:[%s136 + $0x60] sm:$0x7f] %vm827, %v921
        %958 = vst.msk [vmem:[%s136 + $0x68] sm:$0x7f] %vm827, %v922
        %959 = vst.msk [vmem:[%s136 + $0x70] sm:$0x7f] %vm827, %v923
        %960 = vst.msk [vmem:[%s136 + $0x78] sm:$0x7f] %vm827, %v924
        %961 = vst.msk [vmem:[%s136 + $0x80] sm:$0x7f] %vm827, %v925
        %962 = vst.msk [vmem:[%s136 + $0x88] sm:$0x7f] %vm827, %v926
        %963 = vst.msk [vmem:[%s136 + $0x90] sm:$0x7f] %vm827, %v927
        %964 = vst.msk [vmem:[%s136 + $0x98] sm:$0x7f] %vm827, %v928
        %965 = vst.msk [vmem:[%s136 + $0xa0] sm:$0x7f] %vm827, %v929
        %966 = vst.msk [vmem:[%s136 + $0xa8] sm:$0x7f] %vm827, %v930
        %967 = vst.msk [vmem:[%s136 + $0xb0] sm:$0x7f] %vm827, %v931
        %968 = vst.msk [vmem:[%s136 + $0xb8] sm:$0x7f] %vm827, %v932
        %969 = vst.msk [vmem:[%s136 + $0xc0] sm:$0x7f] %vm827, %v933
        %970 = vst.msk [vmem:[%s136 + $0xc8] sm:$0x7f] %vm827, %v934
        %971 = vst.msk [vmem:[%s136 + $0xd0] sm:$0x7f] %vm827, %v935
        %972 = vst.msk [vmem:[%s136 + $0xd8] sm:$0x7f] %vm827, %v936
        %973 = vst.msk [vmem:[%s136 + $0xe0] sm:$0x7f] %vm827, %v937
        %974 = vst.msk [vmem:[%s136 + $0xe8] sm:$0x7f] %vm827, %v938
        %975 = vst.msk [vmem:[%s136 + $0xf0] sm:$0x7f] %vm827, %v939
        %976 = vst.msk [vmem:[%s136 + $0xf8] sm:$0x7f] %vm827, %v940
        %977 = vst.msk [vmem:[%s136 + $0x100] sm:$0x7f] %vm827, %v941
        %978 = vst.msk [vmem:[%s136 + $0x108] sm:$0x7f] %vm827, %v942
        %979 = vst.msk [vmem:[%s136 + $0x110] sm:$0x7f] %vm827, %v943
        %980 = vst.msk [vmem:[%s136 + $0x118] sm:$0x7f] %vm827, %v944
        %p981 = scmp.lt.s32.totalorder %s15, 1
        %s982 = scalar_select %p981, %s15, 1
        %s983 = smul.addr %s982, 36
        %s984 = smul.addr %s983, 8
        %s985 = scalar_lea.vmem %s1, %s984
        // Predicated region
        $region29: #{tpu_custom_call.1} parent=23 // pred_check
          %p986 = pneg %p59
        $region30: #{tpu_custom_call.1} parent=23 // pred_check_branch
          %988 = sbr.rel (%p986) target = $region32
        $region31: #{tpu_custom_call.1} parent=23 // pred_region
          _
        $region32: #{tpu_custom_call.1} parent=23 // pred_fallthru
          _
      $region24: #{tpu_custom_call.1} parent=5 // pred_fallthru
        _
      %p989 = scmp.le.s32.totalorder 2, %s10
      // Predicated region
      $region33: #{tpu_custom_call.1} parent=5 // pred_check
        %p990 = pneg %p989
      $region34: #{tpu_custom_call.1} parent=5 // pred_check_branch
        %992 = sbr.rel (%p990) target = $region36
      $region35: #{tpu_custom_call.1} parent=5 // pred_region
        %s993 = ssub.s32 %s10, 2
        // Predicated region
        $region37: #{tpu_custom_call.1} parent=35 // pred_check
          %p994 = pneg %p65
        $region38: #{tpu_custom_call.1} parent=35 // pred_check_branch
          %996 = sbr.rel (%p994) target = $region40
        $region39: #{tpu_custom_call.1} parent=35 // pred_region
          %p997 = scmp.lt.s32.totalorder %s16, 1
          %s998 = scalar_select %p997, %s16, 1
          %s999 = smul.addr %s998, 36
          %s1000 = smul.addr %s999, 8
          %s1001 = scalar_lea.vmem %s1, %s1000
        $region40: #{tpu_custom_call.1} parent=35 // pred_fallthru
          _
      $region36: #{tpu_custom_call.1} parent=5 // pred_fallthru
        _
    $region6: #{tpu_custom_call.1} parent=1 // loop_footer
      %s14 = sadd.s32 1, %s10
    $region7: #{tpu_custom_call.1} parent=1 // loop_footer_branch
      %9 = sbr.rel target = $region3
    $region8: #{tpu_custom_call.1} parent=1 // loop_exit
      _
    %1002 = vsyncpa [#allocation3], 1
    %s1003 = scalar_lea.sflag [#allocation3], 1
    %1004 = vsyncpa %s1003, 1

</llo_original>
